<compile_context>
chip_gen: v6e
topology: v6e:2x2x1
jax: 0.10.0
libtpu: 0.0.40
codegen_flags: <defaults>
</compile_context>

<pallas_src>
import jax
import jax.numpy as jnp
from jax.experimental import pallas as pl
from jax.experimental.pallas import tpu as pltpu


def _round_up(x, m):
    return -(-x // m) * m


def _cdiv(a, b):
    return -(-a // b)


def _vmem_budget_bytes():
    """Per-generation VMEM budget (leaves headroom for compiler scratch)."""
    cap = 64 * 1024 * 1024
    try:
        info = pltpu.get_tpu_info()
        c = getattr(info, "vmem_capacity_bytes", None)
        if c:
            cap = int(c)
    except Exception:
        pass
    # ~48 MiB on 64-MiB v7x, ~96 MiB on 128-MiB v5e/v6e.
    return min(int(cap * 3 // 4), 96 * 1024 * 1024)


def _select_tiles(M, K_pad, E_pad, in_isz, out_isz, budget):
    """Pick (tm, te): even M split, full-E weight residency when it fits."""
    target_tm = 1024 if budget >= 64 * 1024 * 1024 else 512
    # >=2 M tiles (v7x megacore balance) whenever M is big enough to split.
    num_m = max(_cdiv(M, target_tm), 2 if M >= 32 else 1)
    tm = _round_up(_cdiv(M, num_m), 16)

    te_candidates = [E_pad] + [c for c in (2048, 1024, 512, 256, 128)
                               if c < E_pad and E_pad % c == 0]

    def fits(tm_, te_):
        buf = (2 * (tm_ * K_pad + K_pad * te_) * in_isz   # patches + weight (x2 buf)
               + 2 * te_ * 4                              # bias
               + 2 * tm_ * te_ * out_isz)                 # output
        return buf <= budget - (2 << 20)

    while True:
        for te in te_candidates:
            if fits(tm, te):
                return tm, te
        if tm <= 16:
            return 16, 128
        tm = max(16, _round_up(tm // 2, 16))


def _patch_embed_kernel(p_ref, w_ref, b_ref, o_ref):
    # p_ref: [tm, K_pad]  flattened patches tile (compute dtype)
    # w_ref: [K_pad, te]  projection weight tile (compute dtype)
    # b_ref: [1, te]      bias tile (f32)
    # o_ref: [tm, te]     output tile
    acc = jnp.dot(p_ref[...], w_ref[...], preferred_element_type=jnp.float32)
    o_ref[...] = (acc + b_ref[...]).astype(o_ref.dtype)


def _patch_embedding_impl(x, weight, bias, *, patch_size, compute_dtype,
                          out_dtype=None):
    """Forward of PatchEmbedding: Conv2d(stride=p) -> flatten(2) -> transpose(1,2).

    Args:
      x:      [B, C, H, W]          (NCHW, like the PyTorch module)
      weight: [embed_dim, C, p, p]  (torch Conv2d weight layout)
      bias:   [embed_dim]
    Returns:
      [B, n_patches, embed_dim]
    """
    B, C, H, W = x.shape
    p = patch_size
    E = weight.shape[0]
    Hp, Wp = H // p, W // p
    n_patches = Hp * Wp
    K = C * p * p
    M = B * n_patches

    out_dtype = x.dtype if out_dtype is None else out_dtype
    in_isz = jnp.dtype(compute_dtype).itemsize
    out_isz = jnp.dtype(out_dtype).itemsize

    # ---- tile sizes / padded extents (lane dims multiples of 128) ----------
    K_pad = _round_up(K, 128)
    E_pad = _round_up(E, 128)
    budget = _vmem_budget_bytes()
    tm, te = _select_tiles(M, K_pad, E_pad, in_isz, out_isz, budget)
    M_pad = _round_up(M, tm)
    grid_m = M_pad // tm
    grid_e = E_pad // te
    grid = (grid_m, grid_e)

    # ---- layout glue (pure data movement; candidate for operand fusion) ----
    patches = x.reshape(B, C, Hp, p, Wp, p)
    patches = patches.transpose(0, 2, 4, 1, 3, 5).reshape(M, K)   # (c,kh,kw) order
    patches = jnp.pad(patches, ((0, M_pad - M), (0, K_pad - K)))
    patches = patches.astype(compute_dtype)

    w_mat = weight.reshape(E, K).T                                 # [K, E]
    w_mat = jnp.pad(w_mat, ((0, K_pad - K), (0, E_pad - E))).astype(compute_dtype)
    b_mat = jnp.pad(bias.reshape(1, E), ((0, 0), (0, E_pad - E))).astype(jnp.float32)

    # Weight is fetched once when grid_e == 1 (block index constant over the
    # whole grid); only when E is actually tiled does it get re-fetched per
    # M tile (j is the inner/fast grid axis).
    weight_fetches = grid_m if grid_e > 1 else 1
    cost = pl.CostEstimate(
        flops=2 * M_pad * K_pad * E_pad,
        transcendentals=0,
        bytes_accessed=(M_pad * K_pad * in_isz
                        + weight_fetches * K_pad * E_pad * in_isz
                        + E_pad * 4
                        + M_pad * E_pad * out_isz),
    )

    out = pl.pallas_call(
        _patch_embed_kernel,
        out_shape=jax.ShapeDtypeStruct((M_pad, E_pad), out_dtype),
        grid=grid,
        in_specs=[
            pl.BlockSpec((tm, K_pad), lambda i, j: (i, 0)),   # patches tile
            pl.BlockSpec((K_pad, te), lambda i, j: (0, j)),   # weight tile
            pl.BlockSpec((1, te), lambda i, j: (0, j)),       # bias
        ],
        out_specs=pl.BlockSpec((tm, te), lambda i, j: (i, j)),
        compiler_params=pltpu.CompilerParams(
            dimension_semantics=("parallel", "parallel"),
            vmem_limit_bytes=int(budget),
            allow_input_fusion=[True, False, False],
        ),
        cost_estimate=cost,
    )(patches, w_mat, b_mat)

    return out[:M, :E].reshape(B, n_patches, E)


patch_embedding = jax.jit(
    _patch_embedding_impl,
    static_argnames=("patch_size", "compute_dtype", "out_dtype"))


def _reference(x, weight, bias, p):
    # Same semantics as nn.Conv2d(stride=p) -> flatten(2) -> transpose(1, 2).
    ref = jax.lax.conv_general_dilated(
        x.astype(jnp.float32), weight.astype(jnp.float32),
        window_strides=(p, p), padding="VALID",
        dimension_numbers=("NCHW", "OIHW", "NCHW"),
    ) + bias.astype(jnp.float32).reshape(1, -1, 1, 1)
    B, E = x.shape[0], weight.shape[0]
    return ref.reshape(B, E, -1).transpose(0, 2, 1)


if __name__ == "__main__":
    # Case 1: toy shape (img 16, patch 4, C=4, E=32), f32 compute, tight check.
    B, C, H, W, p, E = 2, 4, 16, 16, 4, 32
    kx, kw, kb = jax.random.split(jax.random.PRNGKey(0), 3)
    x = jax.random.normal(kx, (B, C, H, W), dtype=jnp.float32)
    w = jax.random.normal(kw, (E, C, p, p), dtype=jnp.float32) * 0.02
    b = jax.random.normal(kb, (E,), dtype=jnp.float32) * 0.02

    out = patch_embedding(x, w, b, patch_size=p, compute_dtype=jnp.float32)
    out = jax.block_until_ready(out)
    ref = _reference(x, w, b, p)
    assert out.shape == (B, (H // p) * (W // p), E)
    assert jnp.allclose(out, ref, atol=1e-4, rtol=1e-4)

    # Case 2: bf16 compute + bf16 output fast path; exercises the even M
    # split (M = 720 -> two 368-row tiles) and K/E lane padding (E=160->256).
    B, C, H, W, p, E = 5, 3, 48, 48, 4, 160
    kx, kw, kb = jax.random.split(jax.random.PRNGKey(1), 3)
    x = jax.random.normal(kx, (B, C, H, W), dtype=jnp.float32)
    w = jax.random.normal(kw, (E, C, p, p), dtype=jnp.float32) * 0.02
    b = jax.random.normal(kb, (E,), dtype=jnp.float32) * 0.02

    out = patch_embedding(x, w, b, patch_size=p, compute_dtype=jnp.bfloat16,
                          out_dtype=jnp.bfloat16)
    out = jax.block_until_ready(out)
    ref = _reference(x, w, b, p)
    assert out.shape == (B, (H // p) * (W // p), E)
    assert jnp.allclose(out.astype(jnp.float32), ref, atol=2e-2, rtol=2e-2)

    print("KERNEL_OK")
</pallas_src>

<mosaic_0001>
module attributes {stable_mosaic.version = 11 : i64} {
  func.func @_patch_embed_kernel(%arg0: i32, %arg1: i32, %arg2: memref<16x128xf32, #tpu.memory_space<vmem>>, %arg3: memref<128x128xf32, #tpu.memory_space<vmem>>, %arg4: memref<1x128xf32, #tpu.memory_space<vmem>>, %arg5: memref<16x128xf32, #tpu.memory_space<vmem>>) attributes {dimension_semantics = [#tpu.dimension_semantics<parallel>, #tpu.dimension_semantics<parallel>], iteration_bounds = array<i64: 2, 1>, scalar_prefetch = 0 : i64, scratch_operands = 0 : i64, tpu.core_type = #tpu.core_type<tc>, window_params = [{transform_indices = @transform_0, window_bounds = array<i64: 16, 128>}, {transform_indices = @transform_1, window_bounds = array<i64: 128, 128>}, {transform_indices = @transform_2, window_bounds = array<i64: 1, 128>}, {transform_indices = @transform_3, window_bounds = array<i64: 16, 128>}]} {
    %c0 = arith.constant 0 : index
    %c0_0 = arith.constant 0 : index
    %0 = vector.load %arg2[%c0, %c0_0] : memref<16x128xf32, #tpu.memory_space<vmem>>, vector<16x128xf32>
    %c0_1 = arith.constant 0 : index
    %c0_2 = arith.constant 0 : index
    %1 = vector.load %arg3[%c0_1, %c0_2] : memref<128x128xf32, #tpu.memory_space<vmem>>, vector<128x128xf32>
    %cst = arith.constant dense<0.000000e+00> : vector<16x128xf32>
    %2 = tpu.matmul %0, %1, %cst {dimension_numbers = #tpu.dot_dimension_numbers<[1], [0], [0], [1], [0, 0, 1, 1], [], []>} : vector<16x128xf32>, vector<128x128xf32>, vector<16x128xf32> -> vector<16x128xf32>
    %c0_3 = arith.constant 0 : index
    %c0_4 = arith.constant 0 : index
    %3 = vector.load %arg4[%c0_3, %c0_4] : memref<1x128xf32, #tpu.memory_space<vmem>>, vector<1x128xf32>
    %4 = vector.broadcast %3 : vector<1x128xf32> to vector<16x128xf32>
    %5 = arith.addf %2, %4 : vector<16x128xf32>
    %c0_5 = arith.constant 0 : index
    %c0_6 = arith.constant 0 : index
    %6 = vector.load %arg5[%c0_5, %c0_6] : memref<16x128xf32, #tpu.memory_space<vmem>>, vector<16x128xf32>
    tpu.vector_store %arg5[%c0_5, %c0_6], %5 {strides = array<i32>} : memref<16x128xf32, #tpu.memory_space<vmem>>, vector<16x128xf32>,
    return
  }
  func.func @transform_0(%arg0: i32, %arg1: i32) -> (i32, i32) {
    %c0_i32 = arith.constant 0 : i32
    %c0_i32_0 = arith.constant 0 : i32
    return %arg0, %c0_i32 : i32, i32
  }
  func.func @transform_1(%arg0: i32, %arg1: i32) -> (i32, i32) {
    %c0_i32 = arith.constant 0 : i32
    %c0_i32_0 = arith.constant 0 : i32
    return %c0_i32, %arg1 : i32, i32
  }
  func.func @transform_2(%arg0: i32, %arg1: i32) -> (i32, i32) {
    %c0_i32 = arith.constant 0 : i32
    %c0_i32_0 = arith.constant 0 : i32
    return %c0_i32, %arg1 : i32, i32
  }
  func.func @transform_3(%arg0: i32, %arg1: i32) -> (i32, i32) {
    %c0_i32 = arith.constant 0 : i32
    return %arg0, %arg1 : i32, i32
  }
}

</mosaic_0001>

<llo_original>
// kernel: _patch_embedding_impl.2
$region0: #{_patch_embedding_impl.2}
  #allocation0 [shape = 'u32[]', space=smem, size = 0x4, offset = 0x4, fixed_abs, tag = 'smem constant byte address 0x4 - core index']
  #allocation1 [shape = 'u32[144,128]{1,0:T(1,128)}', space=vmem, size = 0x12000, scoped, tag = 'internal scratch']
  #allocation2 [shape = 'u32[2048]{0}', space=vmem, size = 0x2000, scoped, tag = 'scoped memory for _patch_embedding_impl.2']
  #allocation3 [shape = 'u32[2048]{0}', space=vmem, size = 0x2000, scoped, tag = 'scoped memory for _patch_embedding_impl.2']
  #allocation4 [shape = 'u32[2048]{0}', space=vmem, size = 0x2000, scoped, tag = 'scoped memory for _patch_embedding_impl.2']
  #allocation5 [shape = 'u32[2048]{0}', space=vmem, size = 0x2000, scoped, tag = 'scoped memory for _patch_embedding_impl.2']
  #allocation6 [shape = 'u32[2048]{0}', space=vmem, size = 0x2000, scoped, tag = 'scoped memory for _patch_embedding_impl.2']
  %s0 = inlined_call_operand.vmem [shape: f32[128,128], index: 0, kind: input, shape index: {}]
  %s1 = inlined_call_operand.vmem [shape: f32[1,128], index: 1, kind: input, shape index: {}]
  %s2 = inlined_call_operand.vmem [shape: f32[32,64], index: 2, kind: input, shape index: {}]
  %s3 = inlined_call_operand.<no memory space> [shape: f32[], index: 3, kind: input, shape index: {}]
  %s4 = inlined_call_operand.hbm [shape: f32[32,128], index: 4, kind: output, shape index: {}]
  %s5 = sld [smem:[#allocation0]]
  $region45: #{_patch_embedding_impl.2} parent=0
    _
  %s7 = ssub.s32 1, %s5
  %s8 = scalar_select 0, %s7, %s5
  %v9 = vstv %s3
  $region1: #{_patch_embedding_impl.2} parent=0
    #allocation7 [shape = 'u8[16384]{0}', space=vmem, size = 0x4000, scoped, tag = 'output window, operand 0']
    #allocation8 [shape = 's32[2]{0}', space=sflag, size = 0x8, scoped, tag = 'scoped memory for _patch_embedding_impl.2']
    %10 = vsyncpa [#allocation8], 0
    %s11 = scalar_lea.sflag [#allocation8], 1
    %12 = vsyncpa %s11, 0
    loop: start=0, step=1, limit=4
    $region2: #{_patch_embedding_impl.2} parent=1 // loop_pre_header
      _
    $region3: #{_patch_embedding_impl.2} parent=1 // loop_header
      %s14 = sphi 0, %s18
      %p15 = scmp.ge.s32.totalorder %s14, 4
      %s21 = sphi 0, %s33
      %s22 = sphi 0, %s29
      %s23 = sphi 0, %s21
      %s24 = sphi 0, %s22
      %s25 = sphi 0, %s23
      %s26 = sphi 0, %s24
      %s36 = sphi 0, %s38
      %s39 = sphi 0, %s36
      %s40 = sphi 0, %s39
      %s56 = sphi 0, %s40
      %s62 = sphi 0, %s64
      %s65 = sphi 0, %s62
      %s66 = sphi 0, %s65
      %s82 = sphi 0, %s66
      %s88 = sphi 0, %s90
      %s91 = sphi 0, %s88
      %s92 = sphi 0, %s91
      %s108 = sphi 0, %s92
      %s116 = sphi 0, %s118
      %s119 = sphi 0, %s116
      %s120 = sphi 0, %s119
      %s136 = sphi 0, %s120
    $region4: #{_patch_embedding_impl.2} parent=1 // loop_header_branch
      %17 = sbr.rel (%p15) target = $region8
    $region5: #{_patch_embedding_impl.2} parent=1 // loop_body
      %s19 = ssub.s32 %s14, 1
      %s20 = ssub.s32 %s14, 2
      %s27 = sadd.s32 1, %s22
      %p28 = scmp.ge.s32.totalorder %s27, 1
      %s29 = scalar_select %p28, 0, %s27
      %s30 = sadd.s32 1, %s21
      %s31 = scalar_select %p28, %s30, %s21
      %p32 = scmp.ge.s32.totalorder %s31, 2
      %s33 = scalar_select %p32, 0, %s31
      %s34 = ssub.s32 %s21, %s33
      %p35 = scmp.eq.s32.totalorder %s34, 0
      %s37 = sadd.s32 %s36, 1
      %s38 = scalar_select %p35, %s36, %s37
      %p41 = pneg %p35
      %p42 = scmp.eq.s32.totalorder %s14, 1
      %p43 = por %p41, %p42
      %p44 = scmp.ne.s32.totalorder %s36, %s39
      %p45 = scmp.eq.s32.totalorder %s14, 0
      %p46 = por %p44, %p45
      %p47 = scmp.ne.s32.totalorder %s36, %s39
      %p48 = scmp.eq.s32.totalorder %s19, 1
      %p49 = por %p47, %p48
      %p50 = scmp.ne.s32.totalorder %s39, %s40
      %p51 = scmp.eq.s32.totalorder %s19, 0
      %p52 = por %p50, %p51
      %p53 = scmp.ne.s32.totalorder %s39, %s40
      %p54 = scmp.eq.s32.totalorder %s20, 1
      %p55 = por %p53, %p54
      %p57 = scmp.ne.s32.totalorder %s40, %s56
      %p58 = scmp.eq.s32.totalorder %s20, 0
      %p59 = por %p57, %p58
      %s60 = ssub.s32 %s22, %s29
      %p61 = scmp.eq.s32.totalorder %s60, 0
      %s63 = sadd.s32 %s62, 1
      %s64 = scalar_select %p61, %s62, %s63
      %p67 = pneg %p61
      %p68 = scmp.eq.s32.totalorder %s14, 1
      %p69 = por %p67, %p68
      %p70 = scmp.ne.s32.totalorder %s62, %s65
      %p71 = scmp.eq.s32.totalorder %s14, 0
      %p72 = por %p70, %p71
      %p73 = scmp.ne.s32.totalorder %s62, %s65
      %p74 = scmp.eq.s32.totalorder %s19, 1
      %p75 = por %p73, %p74
      %p76 = scmp.ne.s32.totalorder %s65, %s66
      %p77 = scmp.eq.s32.totalorder %s19, 0
      %p78 = por %p76, %p77
      %p79 = scmp.ne.s32.totalorder %s65, %s66
      %p80 = scmp.eq.s32.totalorder %s20, 1
      %p81 = por %p79, %p80
      %p83 = scmp.ne.s32.totalorder %s66, %s82
      %p84 = scmp.eq.s32.totalorder %s20, 0
      %p85 = por %p83, %p84
      %s86 = ssub.s32 %s22, %s29
      %p87 = scmp.eq.s32.totalorder %s86, 0
      %s89 = sadd.s32 %s88, 1
      %s90 = scalar_select %p87, %s88, %s89
      %p93 = pneg %p87
      %p94 = scmp.eq.s32.totalorder %s14, 1
      %p95 = por %p93, %p94
      %p96 = scmp.ne.s32.totalorder %s88, %s91
      %p97 = scmp.eq.s32.totalorder %s14, 0
      %p98 = por %p96, %p97
      %p99 = scmp.ne.s32.totalorder %s88, %s91
      %p100 = scmp.eq.s32.totalorder %s19, 1
      %p101 = por %p99, %p100
      %p102 = scmp.ne.s32.totalorder %s91, %s92
      %p103 = scmp.eq.s32.totalorder %s19, 0
      %p104 = por %p102, %p103
      %p105 = scmp.ne.s32.totalorder %s91, %s92
      %p106 = scmp.eq.s32.totalorder %s20, 1
      %p107 = por %p105, %p106
      %p109 = scmp.ne.s32.totalorder %s92, %s108
      %p110 = scmp.eq.s32.totalorder %s20, 0
      %p111 = por %p109, %p110
      %s112 = ssub.s32 %s21, %s33
      %s113 = ssub.s32 %s22, %s29
      %s114 = sor.u32 %s112, %s113
      %p115 = scmp.eq.s32.totalorder %s114, 0
      %s117 = sadd.s32 %s116, 1
      %s118 = scalar_select %p115, %s116, %s117
      %p121 = pneg %p115
      %p122 = scmp.eq.s32.totalorder %s14, 1
      %p123 = por %p121, %p122
      %p124 = scmp.ne.s32.totalorder %s116, %s119
      %p125 = scmp.eq.s32.totalorder %s14, 0
      %p126 = por %p124, %p125
      %p127 = scmp.ne.s32.totalorder %s116, %s119
      %p128 = scmp.eq.s32.totalorder %s19, 1
      %p129 = por %p127, %p128
      %p130 = scmp.ne.s32.totalorder %s119, %s120
      %p131 = scmp.eq.s32.totalorder %s19, 0
      %p132 = por %p130, %p131
      %p133 = scmp.ne.s32.totalorder %s119, %s120
      %p134 = scmp.eq.s32.totalorder %s20, 1
      %p135 = por %p133, %p134
      %p137 = scmp.ne.s32.totalorder %s120, %s136
      %p138 = scmp.eq.s32.totalorder %s20, 0
      %p139 = por %p137, %p138
      %p140 = scmp.le.s32.totalorder 1, %s14
      %p141 = scmp.lt.s32.totalorder %s14, 3
      %p142 = pnand %p140, %p141
      %p143 = pneg %p142
      // Predicated region
      $region9: #{_patch_embedding_impl.2} parent=5 // pred_check
        _
      $region10: #{_patch_embedding_impl.2} parent=5 // pred_check_branch
        %145 = sbr.rel (%p142) target = $region12
      $region11: #{_patch_embedding_impl.2} parent=5 // pred_region
        %s146 = ssub.s32 %s14, 1
        // Predicated region
        $region13: #{_patch_embedding_impl.2} parent=11 // pred_check
          %p147 = pneg %p78
        $region14: #{_patch_embedding_impl.2} parent=11 // pred_check_branch
          %149 = sbr.rel (%p147) target = $region16
        $region15: #{_patch_embedding_impl.2} parent=11 // pred_region
          %p150 = scmp.lt.s32.totalorder %s24, 0
          %s151 = scalar_select %p150, %s24, 0
          %s152 = smul.addr %s151, 8
          %s153 = scalar_lea.vmem %s0, %s152
        $region16: #{_patch_embedding_impl.2} parent=11 // pred_fallthru
          _
        // Predicated region
        $region17: #{_patch_embedding_impl.2} parent=11 // pred_check
          %p154 = pneg %p104
        $region18: #{_patch_embedding_impl.2} parent=11 // pred_check_branch
          %156 = sbr.rel (%p154) target = $region20
        $region19: #{_patch_embedding_impl.2} parent=11 // pred_region
          %p157 = scmp.lt.s32.totalorder %s24, 0
          %s158 = scalar_select %p157, %s24, 0
          %s159 = scalar_lea.vmem %s1, %s158
        $region20: #{_patch_embedding_impl.2} parent=11 // pred_fallthru
          _
      $region12: #{_patch_embedding_impl.2} parent=5 // pred_fallthru
        _
      %p160 = scmp.lt.s32.totalorder %s14, 2
      // Predicated region
      $region21: #{_patch_embedding_impl.2} parent=5 // pred_check
        %p161 = pneg %p160
      $region22: #{_patch_embedding_impl.2} parent=5 // pred_check_branch
        %163 = sbr.rel (%p161) target = $region24
      $region23: #{_patch_embedding_impl.2} parent=5 // pred_region
        // Predicated region
        $region25: #{_patch_embedding_impl.2} parent=23 // pred_check
          %p164 = pneg %p46
        $region26: #{_patch_embedding_impl.2} parent=23 // pred_check_branch
          %166 = sbr.rel (%p164) target = $region28
        $region27: #{_patch_embedding_impl.2} parent=23 // pred_region
          %s167 = smul.u32 2, %s21
          %p168 = scmp.lt.s32.totalorder %s167, 3
          %s169 = scalar_select %p168, %s167, 3
          %s170 = smul.addr %s169, 8
          %s171 = scalar_lea.vmem %s2, %s170
          %s172 = smul.u32 2, %s21
        $region28: #{_patch_embedding_impl.2} parent=23 // pred_fallthru
          _
      $region24: #{_patch_embedding_impl.2} parent=5 // pred_fallthru
        _
      %p173 = scmp.le.s32.totalorder 1, %s14
      %p174 = scmp.lt.s32.totalorder %s14, 3
      %p175 = pnand %p173, %p174
      %p176 = pneg %p175
      // Predicated region
      $region29: #{_patch_embedding_impl.2} parent=5 // pred_check
        _
      $region30: #{_patch_embedding_impl.2} parent=5 // pred_check_branch
        %178 = sbr.rel (%p175) target = $region32
      $region31: #{_patch_embedding_impl.2} parent=5 // pred_region
        #allocation9 [shape = 'u8[8192]{0}', space=vmem, size = 0x2000, dematerialized = true, scoped, tag = 'FusionAdapter Buffer %fusion.1 = f32[32,128]{1,0:T(8,128)} fusion(%param_2.1, %param_3), kind=kLoop, calls=%fused_computation.2.clone, metadata={op_name="jit(_patch_embedding_impl)/jit(_pad)/pad" stack_frame_id=9}']
        %s179 = ssub.s32 %s14, 1
        %s180 = smul.u32 2, %s23
        %p181 = scmp.lt.s32.totalorder %s180, 3
        %s182 = scalar_select %p181, %s180, 3
        %s183 = smul.addr %s182, 8
        %s184 = scalar_lea.vmem %s2, %s183
        %p185 = pneg %p52
        %p186 = pneg %p49
        %p187 = scmp.lt.s32.totalorder %s24, 0
        %s188 = scalar_select %p187, %s24, 0
        %s189 = smul.addr %s188, 8
        %s190 = scalar_lea.vmem %s0, %s189
        %p191 = pneg %p78
        %p192 = pneg %p75
        %p193 = scmp.lt.s32.totalorder %s24, 0
        %s194 = scalar_select %p193, %s24, 0
        %s195 = scalar_lea.vmem %s1, %s194
        %p196 = pneg %p104
        %p197 = pneg %p101
        %p198 = pneg %p132
        %p199 = pneg %p129
        %s200 = sand.u32 %s119, 1
        %s201 = scalar_lea.sflag [#allocation8], %s200
        %s202 = sand.u32 %s119, 1
        %s203 = smul.addr %s202, 16
        %s204 = scalar_lea.vmem [#allocation7], %s203
        %s205 = smul.u32 2, %s23
        %p206 = scmp.lt.s32.totalorder %s205, 3
        %s207 = scalar_select %p206, %s205, 3
        %s208 = smul.addr %s207, 8
        %s209 = scalar_lea.vmem %s2, %s208
        %s210 = smul.u32 2, %s23
        %p211 = scmp.lt.s32.totalorder %s24, 0
        %s212 = scalar_select %p211, %s24, 0
        %s213 = smul.addr %s212, 8
        %s214 = scalar_lea.vmem %s0, %s213
        %p215 = scmp.lt.s32.totalorder %s24, 0
        %s216 = scalar_select %p215, %s24, 0
        %s217 = scalar_lea.vmem %s1, %s216
        %s218 = smul.u32 2, %s23
        %v219 = vld [vmem:[%s209] sm:$0xff]
        %v220 = vlaneseq
        %v221 = vand.u32 %v220, 127
        %vm223 = vcmp.lt.s32.totalorder %v221, 64
        %v224 = vsel %vm223, %v219, %v9
        %s226 = ssub.s32 256, 1
        %227 = vst [vmem:[#allocation9] sm:%s226] %v224
        %s228 = scalar_lea.vmem %s209, 8
        %v229 = vld [vmem:[%s228] sm:$0xff]
        %v230 = vlaneseq
        %v231 = vand.u32 %v230, 127
        %vm233 = vcmp.lt.s32.totalorder %v231, 64
        %v234 = vsel %vm233, %v229, %v9
        %s235 = scalar_lea.vmem [#allocation9], 8
        %s237 = ssub.s32 256, 1
        %238 = vst [vmem:[%s235] sm:%s237] %v234
        %v239 = vld [vmem:[#allocation9] sm:$0xff]
        %v240 = vld [vmem:[#allocation9 + $0x8] sm:$0xff]
        %v241 = vld [vmem:[%s214] sm:$0xff]
        %v242 = vld [vmem:[%s214 + $0x8] sm:$0xff]
        %v243 = vld [vmem:[%s214 + $0x10] sm:$0xff]
        %v244 = vld [vmem:[%s214 + $0x18] sm:$0xff]
        %v245 = vld [vmem:[%s214 + $0x20] sm:$0xff]
        %v246 = vld [vmem:[%s214 + $0x28] sm:$0xff]
        %v247 = vld [vmem:[%s214 + $0x30] sm:$0xff]
        %v248 = vld [vmem:[%s214 + $0x38] sm:$0xff]
        %v249 = vld [vmem:[%s214 + $0x40] sm:$0xff]
        %v250 = vld [vmem:[%s214 + $0x48] sm:$0xff]
        %v251 = vld [vmem:[%s214 + $0x50] sm:$0xff]
        %v252 = vld [vmem:[%s214 + $0x58] sm:$0xff]
        %v253 = vld [vmem:[%s214 + $0x60] sm:$0xff]
        %v254 = vld [vmem:[%s214 + $0x68] sm:$0xff]
        %v255 = vld [vmem:[%s214 + $0x70] sm:$0xff]
        %v256 = vld [vmem:[%s214 + $0x78] sm:$0xff]
        %v257 = vld [vmem:[%s217] sm:$0x1]
        %v259 = vlaneseq
        %v260 = vshrl.u32 %v259, 7
        %v261 = vsub.s32 0, %v260
        %v262 = vrot.slane %v257, %v261
        %264 = vmatprep.subr.mxu0 0.0
        %265 = vmatpush1.msra.mxu0 %v256
        %266 = vmatprep.subr.mxu0 0.0
        %267 = vmatpush1.msra.mxu0 %v255
        %268 = vmatprep.subr.mxu0 0.0
        %269 = vmatpush1.msra.mxu0 %v254
        %270 = vmatprep.subr.mxu0 0.0
        %271 = vmatpush1.msra.mxu0 %v253
        %272 = vmatprep.subr.mxu0 0.0
        %273 = vmatpush1.msra.mxu0 %v252
        %274 = vmatprep.subr.mxu0 0.0
        %275 = vmatpush1.msra.mxu0 %v251
        %276 = vmatprep.subr.mxu0 0.0
        %277 = vmatpush1.msra.mxu0 %v250
        %278 = vmatprep.subr.mxu0 0.0
        %279 = vmatpush1.msra.mxu0 %v249
        %280 = vmatprep.subr.mxu0 0.0
        %281 = vmatpush1.msra.mxu0 %v248
        %282 = vmatprep.subr.mxu0 0.0
        %283 = vmatpush1.msra.mxu0 %v247
        %284 = vmatprep.subr.mxu0 0.0
        %285 = vmatpush1.msra.mxu0 %v246
        %286 = vmatprep.subr.mxu0 0.0
        %287 = vmatpush1.msra.mxu0 %v245
        %288 = vmatprep.subr.mxu0 0.0
        %289 = vmatpush1.msra.mxu0 %v244
        %290 = vmatprep.subr.mxu0 0.0
        %291 = vmatpush1.msra.mxu0 %v243
        %292 = vmatprep.subr.mxu0 0.0
        %293 = vmatpush1.msra.mxu0 %v242
        %294 = vmatprep.subr.mxu0 0.0
        %295 = vmatpush1.msra.mxu0 %v241
        %296 = vmatprep.subr.mxu0 0.0
        %297 = vmatpush2.msra.mxu0 0.0
        %298 = vmatprep.subr.mxu0 0.0
        %299 = vmatpush2.msra.mxu0 0.0
        %300 = vmatprep.subr.mxu0 0.0
        %301 = vmatpush2.msra.mxu0 0.0
        %302 = vmatprep.subr.mxu0 0.0
        %303 = vmatpush2.msra.mxu0 0.0
        %304 = vmatprep.subr.mxu0 0.0
        %305 = vmatpush2.msra.mxu0 0.0
        %306 = vmatprep.subr.mxu0 0.0
        %307 = vmatpush2.msra.mxu0 0.0
        %308 = vmatprep.subr.mxu0 0.0
        %309 = vmatpush2.msra.mxu0 0.0
        %310 = vmatprep.subr.mxu0 0.0
        %311 = vmatpush2.msra.mxu0 0.0
        %312 = vmatprep.subr.mxu0 0.0
        %313 = vmatpush2.msra.mxu0 0.0
        %314 = vmatprep.subr.mxu0 0.0
        %315 = vmatpush2.msra.mxu0 0.0
        %316 = vmatprep.subr.mxu0 0.0
        %317 = vmatpush2.msra.mxu0 0.0
        %318 = vmatprep.subr.mxu0 0.0
        %319 = vmatpush2.msra.mxu0 0.0
        %320 = vmatprep.subr.mxu0 0.0
        %321 = vmatpush2.msra.mxu0 0.0
        %322 = vmatprep.subr.mxu0 0.0
        %323 = vmatpush2.msra.mxu0 0.0
        %324 = vmatprep.subr.mxu0 0.0
        %325 = vmatpush2.msra.mxu0 0.0
        %326 = vmatprep.subr.mxu0 0.0
        %327 = vmatpush2.msra.mxu0 0.0
        %328 = vmatprep.mubr.f32.mxu0 0.0
        %329 = vmatmul.mubr.f32.gmra.mxu0 %v239
        %v330 = vpop.f32.mrf.mxu0
        %v331 = vadd.f32 %v262, %v330
        %v332 = vpop.f32.mrf.mxu0
        %333 = vmatprep.mubr.f32.mxu0 0.0
        %334 = vmatmul.mubr.f32.gmra.mxu0 %v240
        %v335 = vpop.f32.mrf.mxu0
        %v336 = vadd.f32 %v262, %v335
        %v337 = vpop.f32.mrf.mxu0
        %338 = vdwg.mxu0
        %339 = vst [vmem:[%s204] sm:$0xff] %v331
        %340 = vst [vmem:[%s204 + $0x8] sm:$0xff] %v336
        %s341 = sand.u32 %s119, 1
        %s342 = scalar_lea.sflag [#allocation8], %s341
        %s343 = sand.u32 %s119, 1
        %s344 = smul.addr %s343, 16
        %s345 = scalar_lea.vmem [#allocation7], %s344
        // Predicated region
        $region33: #{_patch_embedding_impl.2} parent=31 // pred_check
          %p346 = pneg %p129
        $region34: #{_patch_embedding_impl.2} parent=31 // pred_check_branch
          %348 = sbr.rel (%p346) target = $region36
        $region35: #{_patch_embedding_impl.2} parent=31 // pred_region
          %s349 = smul.u32 2, %s23
          %s351 = ssub.s32 256, 256
          %352 = vsyncadd %s342, %s351
          %s353 = sadd.s32 %s24, %s349
          %s354 = smul.addr %s353, 128
          %s355 = scalar_lea.hbm %s4, %s354
          %s356 = sshll.u32 %s345, 4
          %s357 = int_to_ptr.vmem [resolvable:$true] %s356
          %362 = dma.vmem_to_hbm [thread:$0]  %s357, 256, %s355, %s342, 128, 128, 8
        $region36: #{_patch_embedding_impl.2} parent=31 // pred_fallthru
          _
      $region32: #{_patch_embedding_impl.2} parent=5 // pred_fallthru
        _
      %p363 = scmp.le.s32.totalorder 2, %s14
      // Predicated region
      $region37: #{_patch_embedding_impl.2} parent=5 // pred_check
        %p364 = pneg %p363
      $region38: #{_patch_embedding_impl.2} parent=5 // pred_check_branch
        %366 = sbr.rel (%p364) target = $region40
      $region39: #{_patch_embedding_impl.2} parent=5 // pred_region
        %s367 = ssub.s32 %s14, 2
        // Predicated region
        $region41: #{_patch_embedding_impl.2} parent=39 // pred_check
          %p368 = pneg %p135
        $region42: #{_patch_embedding_impl.2} parent=39 // pred_check_branch
          %370 = sbr.rel (%p368) target = $region44
        $region43: #{_patch_embedding_impl.2} parent=39 // pred_region
          %s371 = sand.u32 %s120, 1
          %s372 = scalar_lea.sflag [#allocation8], %s371
          %s373 = sand.u32 %s120, 1
          %s374 = smul.addr %s373, 16
          %s375 = scalar_lea.vmem [#allocation7], %s374
          %376 = dma.done %s372, 256
        $region44: #{_patch_embedding_impl.2} parent=39 // pred_fallthru
          _
      $region40: #{_patch_embedding_impl.2} parent=5 // pred_fallthru
        _
    $region6: #{_patch_embedding_impl.2} parent=1 // loop_footer
      %s18 = sadd.s32 1, %s14
    $region7: #{_patch_embedding_impl.2} parent=1 // loop_footer_branch
      %13 = sbr.rel target = $region3
    $region8: #{_patch_embedding_impl.2} parent=1 // loop_exit
      _
    %377 = vsyncpa [#allocation8], 1
    %s378 = scalar_lea.sflag [#allocation8], 1
    %379 = vsyncpa %s378, 1

</llo_original>
